<compile_context>
chip_gen: v5e
topology: v5e:2x2
jax: 0.10.0
libtpu: 0.0.40
codegen_flags: <defaults>
</compile_context>

<pallas_src>
import functools
import math

import numpy as np
import jax
import jax.numpy as jnp
from jax.experimental import pallas as pl
from jax.experimental.pallas import tpu as pltpu


def build_sinc_filter(kernel_size, cutoff):
    # Exact reproduction of the reference numpy filter construction (including its quirks,
    # e.g. the constant 0.08*cos(4*pi*M) Blackman term).
    assert kernel_size % 2 == 1
    M = kernel_size - 1
    filt = np.zeros(kernel_size, dtype=np.float32)
    for i in range(kernel_size):
        if i == M // 2:
            filt[i] = 2 * np.pi * cutoff
        else:
            filt[i] = (np.sin(2 * np.pi * cutoff * (i - M // 2)) / (i - M // 2)
                       * (0.42 - 0.5 * np.cos(2 * np.pi * i / M)
                          + 0.08 * np.cos(4 * np.pi * M)))
    filt = filt / np.sum(filt)
    return filt


def _round_up(a, b):
    return ((a + b - 1) // b) * b


def _resample_down_kernel(xm_ref, xh_ref, o_ref, xbuf_ref, *,
                          taps, stride, t_out, block_rows, halo, chunk):
    """Depthwise strided 1-D correlation on a phase-major polyphase tile.

    taps  : tuple of Python floats (compile-time constants), length K
    xm_ref: (s, block_rows, t_out)   phase samples for this output tile
    xh_ref: (s, block_rows, halo)    next `halo` phase samples (tile halo)
    o_ref : (block_rows, t_out)      output tile
    xbuf  : (s, 8, 128 + halo)       scratch: last 128 main lanes ++ halo, per 8-row group

    out[r, t] = sum_k f[k] * x_pad[r, t*stride + k]
              = sum_{p < s, o} f[o*s + p] * phase_p[r, t + o]
    """
    K = len(taps)
    s = stride
    n_rg = block_rows // 8
    n_ch = t_out // chunk
    tail0 = t_out - 128          # start of the staged main-tile tail
    edge = chunk - 128           # split point inside the last lane chunk

    for rg in range(n_rg):                     # static unroll over 8-row groups
        r0 = rg * 8
        rows = pl.ds(r0, 8)
        # Stage (last 128 main lanes ++ halo) contiguously so taps shifted past the tile
        # edge become plain unit-stride reads.  Only (1 + halo/128) vregs per phase.
        for p in range(s):
            xbuf_ref[p, :, pl.ds(0, 128)] = xm_ref[p, rows, pl.ds(tail0, 128)]
            xbuf_ref[p, :, pl.ds(128, halo)] = xh_ref[p, rows, :]

        for c in range(n_ch):                  # lane chunks keep the accumulator in vregs
            col0 = c * chunk
            if c < n_ch - 1:
                acc = jnp.zeros((8, chunk), jnp.float32)
                for p in range(s):
                    for o in range((K - 1 - p) // s + 1):
                        xk = xm_ref[p, rows, pl.ds(col0 + o, chunk)]
                        acc = acc + xk.astype(jnp.float32) * taps[o * s + p]
                o_ref[rows, pl.ds(col0, chunk)] = acc.astype(o_ref.dtype)
            else:
                # Last chunk: shifted windows (o > 0) run past the tile edge.  Split into
                # a main-resident part (lanes [0, chunk-128)) and a 128-lane tail that
                # reads from the staged tail++halo buffer.
                acc_a = jnp.zeros((8, edge), jnp.float32) if edge > 0 else None
                acc_b = jnp.zeros((8, 128), jnp.float32)
                for p in range(s):
                    for o in range((K - 1 - p) // s + 1):
                        f_k = taps[o * s + p]
                        if edge > 0:
                            xa = xm_ref[p, rows, pl.ds(col0 + o, edge)]
                            acc_a = acc_a + xa.astype(jnp.float32) * f_k
                        xb = xbuf_ref[p, :, pl.ds(o, 128)]
                        acc_b = acc_b + xb.astype(jnp.float32) * f_k
                if edge > 0:
                    o_ref[rows, pl.ds(col0, edge)] = acc_a.astype(o_ref.dtype)
                o_ref[rows, pl.ds(col0 + edge, 128)] = acc_b.astype(o_ref.dtype)


class Resample1d:
    """JAX/Pallas port of waveunet_utils.Resample1d (forward, transpose=False)."""

    def __init__(self, channels, kernel_size, stride, transpose=False,
                 padding="reflect", trainable=False):
        assert kernel_size > 2
        assert (kernel_size - 1) % 2 == 0
        assert padding in ("reflect", "valid")
        self.channels = channels
        self.kernel_size = kernel_size
        self.stride = stride
        self.transpose = transpose
        self.padding = padding
        # TODO(synk): trainable=True (learnable filter) is not supported; the sinc filter
        # is baked into the kernel as compile-time constants.
        cutoff = 0.5 / stride
        filt = build_sinc_filter(kernel_size, cutoff)                    # (K,) float32
        self._taps = tuple(float(v) for v in filt)                       # per-tap constants
        # PyTorch stores the parameter as (8, 1, K) and calls conv1d with groups=8;
        # the filter is identical for every channel.
        self.filter = jnp.asarray(np.repeat(filt[None, :], 8, axis=0))   # (8, K)

    def __call__(self, x):
        if self.transpose:
            # TODO(synk): the transpose (upsampling) branch of the reference forward is
            # broken as written (tuple arithmetic on x.shape); not implemented here.
            raise NotImplementedError("transpose=True path not implemented")

        N, C, W = x.shape
        assert C == 8, "reference conv1d uses groups=8 with an (8, 1, K) filter"
        K, s = self.kernel_size, self.stride

        num_pad = (K - 1) // 2 if self.padding != "valid" else 0
        x2 = x.reshape(N * C, W)
        if num_pad:
            x2 = jnp.pad(x2, ((0, 0), (num_pad, num_pad)), mode="reflect")
        w_in = W + 2 * num_pad
        w_out = (w_in - K) // s + 1
        assert w_out > 0

        # ---- tiling parameters -------------------------------------------------------
        halo = _round_up(max(K - 1, 1), 128)            # per-phase halo (lane aligned)
        assert K - 1 <= halo and (K - 1) // s <= 128    # staging / chunk-split invariants

        R = N * C
        r_pad = _round_up(R, 8)
        if r_pad >= 64:                   # big row blocks; pad rows up, no divisor search
            block_rows = 64
            r_pad = _round_up(r_pad, 64)
        else:
            block_rows = r_pad
        n_r = r_pad // block_rows

        if _round_up(w_out, 128) <= 1024:
            t_out = _round_up(w_out, halo)              # single in-kernel lane chunk
            chunk = t_out
        else:
            chunk = 1024                                # in-kernel lane chunk (vreg budget)
            unit = chunk * halo // math.gcd(chunk, halo)
            cap = max(unit, (4096 // unit) * unit)      # lane-dense tiles up to 4096
            t_out = min(cap, _round_up(w_out, unit))
            if n_r == 1 and t_out > unit:
                # keep >= 2 parallel grid steps for v7x's two TensorCores
                t_out = min(t_out, max(unit, _round_up(-(-w_out // 2), unit)))
        n_w = -(-w_out // t_out)
        w_out_pad = n_w * t_out

        # Phase-major polyphase layout (s, r_pad, L): phase_p[r, i] = x_pad[r, i*s + p].
        # Built as one pad + (row-major, free) reshape + transpose chain -> a single fused
        # HBM copy pass in XLA.
        # TODO(synk): this remaining extra HBM pass could be removed by de-interleaving
        # phases inside the kernel (strided lane reads); kept wrapper-side for robustness.
        L = _round_up(max(w_out_pad + halo, -(-w_in // s)), 128)
        x2 = jnp.pad(x2, ((0, r_pad - R), (0, L * s - w_in)))
        xp = x2.reshape(r_pad, L, s).transpose(2, 0, 1)          # (s, r_pad, L)

        kernel = functools.partial(
            _resample_down_kernel, taps=self._taps, stride=s, t_out=t_out,
            block_rows=block_rows, halo=halo, chunk=chunk)

        # Explicit scoped-VMEM limit: double-buffered inputs + output + scratch + margin.
        ebytes = jnp.dtype(x.dtype).itemsize
        vmem_bytes = (2 * s * block_rows * (t_out + halo) * ebytes   # in (double-buffered)
                      + 2 * block_rows * t_out * ebytes              # out (double-buffered)
                      + s * 8 * (128 + halo) * ebytes)               # scratch
        vmem_limit = int(max(16 << 20, vmem_bytes + (2 << 20)))

        out = pl.pallas_call(
            kernel,
            out_shape=jax.ShapeDtypeStruct((r_pad, w_out_pad), x.dtype),
            grid=(n_r, n_w),
            in_specs=[
                pl.BlockSpec((s, block_rows, t_out), lambda r, j: (0, r, j)),
                pl.BlockSpec((s, block_rows, halo),
                             lambda r, j: (0, r, (j + 1) * (t_out // halo))),
            ],
            out_specs=pl.BlockSpec((block_rows, t_out), lambda r, j: (r, j)),
            scratch_shapes=[pltpu.VMEM((s, 8, 128 + halo), x.dtype)],
            compiler_params=pltpu.CompilerParams(
                dimension_semantics=("parallel", "parallel"),
                vmem_limit_bytes=vmem_limit),
        )(xp, xp)

        return out[:R, :w_out].reshape(N, C, w_out)


def _reference_resample(x_np, filt_np, kernel_size, stride, padding):
    # Pure-numpy reference of F.conv1d(pad(x), filter(8,1,K), stride, groups=8).
    K = kernel_size
    if padding != "valid":
        num_pad = (K - 1) // 2
        xp = np.pad(x_np, ((0, 0), (0, 0), (num_pad, num_pad)), mode="reflect")
    else:
        xp = x_np
    w_out = (xp.shape[-1] - K) // stride + 1
    out = np.zeros((x_np.shape[0], x_np.shape[1], w_out), np.float32)
    for t in range(w_out):
        out[:, :, t] = np.sum(
            xp[:, :, t * stride:t * stride + K] * filt_np[None], axis=-1)
    return out


if __name__ == "__main__":
    C, K, stride = 8, 15, 2
    layer = Resample1d(channels=C, kernel_size=K, stride=stride, padding="reflect")

    # Small case (single tile, single lane chunk, tail-only accumulation path).
    N, W = 2, 17
    x = jax.random.normal(jax.random.PRNGKey(0), (N, C, W), dtype=jnp.float32)
    y = jax.block_until_ready(layer(x))
    ref = _reference_resample(np.asarray(x), np.asarray(layer.filter), K, stride, "reflect")
    assert y.shape == ref.shape, (y.shape, ref.shape)
    np.testing.assert_allclose(np.asarray(y), ref, rtol=1e-5, atol=1e-5)

    # Larger case: multiple output tiles, multiple in-kernel chunks, halo path, >1 row group.
    N2, W2 = 5, 6000
    x2 = jax.random.normal(jax.random.PRNGKey(1), (N2, C, W2), dtype=jnp.float32)
    y2 = jax.block_until_ready(layer(x2))
    ref2 = _reference_resample(np.asarray(x2), np.asarray(layer.filter), K, stride, "reflect")
    assert y2.shape == ref2.shape, (y2.shape, ref2.shape)
    np.testing.assert_allclose(np.asarray(y2), ref2, rtol=1e-5, atol=1e-5)

    print("KERNEL_OK")
</pallas_src>

<mosaic_0001>
module attributes {stable_mosaic.version = 11 : i64} {
  func.func @_resample_down_kernel(%arg0: i32, %arg1: i32, %arg2: memref<2x16x128xf32, #tpu.memory_space<vmem>>, %arg3: memref<2x16x128xf32, #tpu.memory_space<vmem>>, %arg4: memref<16x128xf32, #tpu.memory_space<vmem>>, %arg5: memref<2x8x256xf32, #tpu.memory_space<vmem>>) attributes {dimension_semantics = [#tpu.dimension_semantics<parallel>, #tpu.dimension_semantics<parallel>], iteration_bounds = array<i64: 1, 1>, scalar_prefetch = 0 : i64, scratch_operands = 1 : i64, tpu.core_type = #tpu.core_type<tc>, window_params = [{transform_indices = @transform_0, window_bounds = array<i64: 2, 16, 128>}, {transform_indices = @transform_1, window_bounds = array<i64: 2, 16, 128>}, {transform_indices = @transform_2, window_bounds = array<i64: 16, 128>}]} {
    %c0 = arith.constant 0 : index
    %c0_0 = arith.constant 0 : index
    %c0_1 = arith.constant 0 : index
    %0 = vector.load %arg2[%c0, %c0_0, %c0_1] : memref<2x16x128xf32, #tpu.memory_space<vmem>>, vector<1x8x128xf32>
    %1 = vector.shape_cast %0 : vector<1x8x128xf32> to vector<8x128xf32>
    %c0_2 = arith.constant 0 : index
    %c0_3 = arith.constant 0 : index
    %c0_4 = arith.constant 0 : index
    %2 = vector.load %arg5[%c0_2, %c0_3, %c0_4] : memref<2x8x256xf32, #tpu.memory_space<vmem>>, vector<1x8x128xf32>
    %3 = vector.shape_cast %2 : vector<1x8x128xf32> to vector<8x128xf32>
    %4 = vector.shape_cast %1 : vector<8x128xf32> to vector<1x8x128xf32>
    tpu.vector_store %arg5[%c0_2, %c0_3, %c0_4], %4 {strides = array<i32>} : memref<2x8x256xf32, #tpu.memory_space<vmem>>, vector<1x8x128xf32>,
    %c0_5 = arith.constant 0 : index
    %c0_6 = arith.constant 0 : index
    %c0_7 = arith.constant 0 : index
    %5 = vector.load %arg3[%c0_5, %c0_6, %c0_7] : memref<2x16x128xf32, #tpu.memory_space<vmem>>, vector<1x8x128xf32>
    %6 = vector.shape_cast %5 : vector<1x8x128xf32> to vector<8x128xf32>
    %c0_8 = arith.constant 0 : index
    %c0_9 = arith.constant 0 : index
    %c128 = arith.constant 128 : index
    %7 = vector.load %arg5[%c0_8, %c0_9, %c128] : memref<2x8x256xf32, #tpu.memory_space<vmem>>, vector<1x8x128xf32>
    %8 = vector.shape_cast %7 : vector<1x8x128xf32> to vector<8x128xf32>
    %9 = vector.shape_cast %6 : vector<8x128xf32> to vector<1x8x128xf32>
    tpu.vector_store %arg5[%c0_8, %c0_9, %c128], %9 {strides = array<i32>} : memref<2x8x256xf32, #tpu.memory_space<vmem>>, vector<1x8x128xf32>,
    %c1 = arith.constant 1 : index
    %c0_10 = arith.constant 0 : index
    %c0_11 = arith.constant 0 : index
    %10 = vector.load %arg2[%c1, %c0_10, %c0_11] : memref<2x16x128xf32, #tpu.memory_space<vmem>>, vector<1x8x128xf32>
    %11 = vector.shape_cast %10 : vector<1x8x128xf32> to vector<8x128xf32>
    %c1_12 = arith.constant 1 : index
    %c0_13 = arith.constant 0 : index
    %c0_14 = arith.constant 0 : index
    %12 = vector.load %arg5[%c1_12, %c0_13, %c0_14] : memref<2x8x256xf32, #tpu.memory_space<vmem>>, vector<1x8x128xf32>
    %13 = vector.shape_cast %12 : vector<1x8x128xf32> to vector<8x128xf32>
    %14 = vector.shape_cast %11 : vector<8x128xf32> to vector<1x8x128xf32>
    tpu.vector_store %arg5[%c1_12, %c0_13, %c0_14], %14 {strides = array<i32>} : memref<2x8x256xf32, #tpu.memory_space<vmem>>, vector<1x8x128xf32>,
    %c1_15 = arith.constant 1 : index
    %c0_16 = arith.constant 0 : index
    %c0_17 = arith.constant 0 : index
    %15 = vector.load %arg3[%c1_15, %c0_16, %c0_17] : memref<2x16x128xf32, #tpu.memory_space<vmem>>, vector<1x8x128xf32>
    %16 = vector.shape_cast %15 : vector<1x8x128xf32> to vector<8x128xf32>
    %c1_18 = arith.constant 1 : index
    %c0_19 = arith.constant 0 : index
    %c128_20 = arith.constant 128 : index
    %17 = vector.load %arg5[%c1_18, %c0_19, %c128_20] : memref<2x8x256xf32, #tpu.memory_space<vmem>>, vector<1x8x128xf32>
    %18 = vector.shape_cast %17 : vector<1x8x128xf32> to vector<8x128xf32>
    %19 = vector.shape_cast %16 : vector<8x128xf32> to vector<1x8x128xf32>
    tpu.vector_store %arg5[%c1_18, %c0_19, %c128_20], %19 {strides = array<i32>} : memref<2x8x256xf32, #tpu.memory_space<vmem>>, vector<1x8x128xf32>,
    %cst = arith.constant 0.000000e+00 : f32
    %20 = vector.broadcast %cst : f32 to vector<8x128xf32>
    %c0_21 = arith.constant 0 : index
    %c0_22 = arith.constant 0 : index
    %c0_23 = arith.constant 0 : index
    %21 = vector.load %arg5[%c0_21, %c0_22, %c0_23] : memref<2x8x256xf32, #tpu.memory_space<vmem>>, vector<1x8x128xf32>
    %22 = vector.shape_cast %21 : vector<1x8x128xf32> to vector<8x128xf32>
    %cst_24 = arith.constant 6.3147092E-19 : f32
    %23 = vector.broadcast %cst_24 : f32 to vector<8x128xf32>
    %24 = arith.mulf %22, %23 : vector<8x128xf32>
    %25 = arith.addf %20, %24 : vector<8x128xf32>
    %c0_25 = arith.constant 0 : index
    %c0_26 = arith.constant 0 : index
    %c1_27 = arith.constant 1 : index
    %26 = vector.load %arg5[%c0_25, %c0_26, %c1_27] : memref<2x8x256xf32, #tpu.memory_space<vmem>>, vector<1x8x128xf32>
    %27 = vector.shape_cast %26 : vector<1x8x128xf32> to vector<8x128xf32>
    %cst_28 = arith.constant 0.0119924499 : f32
    %28 = vector.broadcast %cst_28 : f32 to vector<8x128xf32>
    %29 = arith.mulf %27, %28 : vector<8x128xf32>
    %30 = arith.addf %25, %29 : vector<8x128xf32>
    %c0_29 = arith.constant 0 : index
    %c0_30 = arith.constant 0 : index
    %c2 = arith.constant 2 : index
    %31 = vector.load %arg5[%c0_29, %c0_30, %c2] : memref<2x8x256xf32, #tpu.memory_space<vmem>>, vector<1x8x128xf32>
    %32 = vector.shape_cast %31 : vector<1x8x128xf32> to vector<8x128xf32>
    %cst_31 = arith.constant -0.0648987293 : f32
    %33 = vector.broadcast %cst_31 : f32 to vector<8x128xf32>
    %34 = arith.mulf %32, %33 : vector<8x128xf32>
    %35 = arith.addf %30, %34 : vector<8x128xf32>
    %c0_32 = arith.constant 0 : index
    %c0_33 = arith.constant 0 : index
    %c3 = arith.constant 3 : index
    %36 = vector.load %arg5[%c0_32, %c0_33, %c3] : memref<2x8x256xf32, #tpu.memory_space<vmem>>, vector<1x8x128xf32>
    %37 = vector.shape_cast %36 : vector<1x8x128xf32> to vector<8x128xf32>
    %cst_34 = arith.constant 0.302744448 : f32
    %38 = vector.broadcast %cst_34 : f32 to vector<8x128xf32>
    %39 = arith.mulf %37, %38 : vector<8x128xf32>
    %40 = arith.addf %35, %39 : vector<8x128xf32>
    %c0_35 = arith.constant 0 : index
    %c0_36 = arith.constant 0 : index
    %c4 = arith.constant 4 : index
    %41 = vector.load %arg5[%c0_35, %c0_36, %c4] : memref<2x8x256xf32, #tpu.memory_space<vmem>>, vector<1x8x128xf32>
    %42 = vector.shape_cast %41 : vector<1x8x128xf32> to vector<8x128xf32>
    %cst_37 = arith.constant 0.302744448 : f32
    %43 = vector.broadcast %cst_37 : f32 to vector<8x128xf32>
    %44 = arith.mulf %42, %43 : vector<8x128xf32>
    %45 = arith.addf %40, %44 : vector<8x128xf32>
    %c0_38 = arith.constant 0 : index
    %c0_39 = arith.constant 0 : index
    %c5 = arith.constant 5 : index
    %46 = vector.load %arg5[%c0_38, %c0_39, %c5] : memref<2x8x256xf32, #tpu.memory_space<vmem>>, vector<1x8x128xf32>
    %47 = vector.shape_cast %46 : vector<1x8x128xf32> to vector<8x128xf32>
    %cst_40 = arith.constant -0.0648987293 : f32
    %48 = vector.broadcast %cst_40 : f32 to vector<8x128xf32>
    %49 = arith.mulf %47, %48 : vector<8x128xf32>
    %50 = arith.addf %45, %49 : vector<8x128xf32>
    %c0_41 = arith.constant 0 : index
    %c0_42 = arith.constant 0 : index
    %c6 = arith.constant 6 : index
    %51 = vector.load %arg5[%c0_41, %c0_42, %c6] : memref<2x8x256xf32, #tpu.memory_space<vmem>>, vector<1x8x128xf32>
    %52 = vector.shape_cast %51 : vector<1x8x128xf32> to vector<8x128xf32>
    %cst_43 = arith.constant 0.0119924499 : f32
    %53 = vector.broadcast %cst_43 : f32 to vector<8x128xf32>
    %54 = arith.mulf %52, %53 : vector<8x128xf32>
    %55 = arith.addf %50, %54 : vector<8x128xf32>
    %c0_44 = arith.constant 0 : index
    %c0_45 = arith.constant 0 : index
    %c7 = arith.constant 7 : index
    %56 = vector.load %arg5[%c0_44, %c0_45, %c7] : memref<2x8x256xf32, #tpu.memory_space<vmem>>, vector<1x8x128xf32>
    %57 = vector.shape_cast %56 : vector<1x8x128xf32> to vector<8x128xf32>
    %cst_46 = arith.constant 6.3147092E-19 : f32
    %58 = vector.broadcast %cst_46 : f32 to vector<8x128xf32>
    %59 = arith.mulf %57, %58 : vector<8x128xf32>
    %60 = arith.addf %55, %59 : vector<8x128xf32>
    %c1_47 = arith.constant 1 : index
    %c0_48 = arith.constant 0 : index
    %c0_49 = arith.constant 0 : index
    %61 = vector.load %arg5[%c1_47, %c0_48, %c0_49] : memref<2x8x256xf32, #tpu.memory_space<vmem>>, vector<1x8x128xf32>
    %62 = vector.shape_cast %61 : vector<1x8x128xf32> to vector<8x128xf32>
    %cst_50 = arith.constant 9.6572561E-19 : f32
    %63 = vector.broadcast %cst_50 : f32 to vector<8x128xf32>
    %64 = arith.mulf %62, %63 : vector<8x128xf32>
    %65 = arith.addf %60, %64 : vector<8x128xf32>
    %c1_51 = arith.constant 1 : index
    %c0_52 = arith.constant 0 : index
    %c1_53 = arith.constant 1 : index
    %66 = vector.load %arg5[%c1_51, %c0_52, %c1_53] : memref<2x8x256xf32, #tpu.memory_space<vmem>>, vector<1x8x128xf32>
    %67 = vector.shape_cast %66 : vector<1x8x128xf32> to vector<8x128xf32>
    %cst_54 = arith.constant -7.58177206E-18 : f32
    %68 = vector.broadcast %cst_54 : f32 to vector<8x128xf32>
    %69 = arith.mulf %67, %68 : vector<8x128xf32>
    %70 = arith.addf %65, %69 : vector<8x128xf32>
    %c1_55 = arith.constant 1 : index
    %c0_56 = arith.constant 0 : index
    %c2_57 = arith.constant 2 : index
    %71 = vector.load %arg5[%c1_55, %c0_56, %c2_57] : memref<2x8x256xf32, #tpu.memory_space<vmem>>, vector<1x8x128xf32>
    %72 = vector.shape_cast %71 : vector<1x8x128xf32> to vector<8x128xf32>
    %cst_58 = arith.constant 1.58318465E-17 : f32
    %73 = vector.broadcast %cst_58 : f32 to vector<8x128xf32>
    %74 = arith.mulf %72, %73 : vector<8x128xf32>
    %75 = arith.addf %70, %74 : vector<8x128xf32>
    %c1_59 = arith.constant 1 : index
    %c0_60 = arith.constant 0 : index
    %c3_61 = arith.constant 3 : index
    %76 = vector.load %arg5[%c1_59, %c0_60, %c3_61] : memref<2x8x256xf32, #tpu.memory_space<vmem>>, vector<1x8x128xf32>
    %77 = vector.shape_cast %76 : vector<1x8x128xf32> to vector<8x128xf32>
    %cst_62 = arith.constant 0.500323653 : f32
    %78 = vector.broadcast %cst_62 : f32 to vector<8x128xf32>
    %79 = arith.mulf %77, %78 : vector<8x128xf32>
    %80 = arith.addf %75, %79 : vector<8x128xf32>
    %c1_63 = arith.constant 1 : index
    %c0_64 = arith.constant 0 : index
    %c4_65 = arith.constant 4 : index
    %81 = vector.load %arg5[%c1_63, %c0_64, %c4_65] : memref<2x8x256xf32, #tpu.memory_space<vmem>>, vector<1x8x128xf32>
    %82 = vector.shape_cast %81 : vector<1x8x128xf32> to vector<8x128xf32>
    %cst_66 = arith.constant 1.58318465E-17 : f32
    %83 = vector.broadcast %cst_66 : f32 to vector<8x128xf32>
    %84 = arith.mulf %82, %83 : vector<8x128xf32>
    %85 = arith.addf %80, %84 : vector<8x128xf32>
    %c1_67 = arith.constant 1 : index
    %c0_68 = arith.constant 0 : index
    %c5_69 = arith.constant 5 : index
    %86 = vector.load %arg5[%c1_67, %c0_68, %c5_69] : memref<2x8x256xf32, #tpu.memory_space<vmem>>, vector<1x8x128xf32>
    %87 = vector.shape_cast %86 : vector<1x8x128xf32> to vector<8x128xf32>
    %cst_70 = arith.constant -7.58177206E-18 : f32
    %88 = vector.broadcast %cst_70 : f32 to vector<8x128xf32>
    %89 = arith.mulf %87, %88 : vector<8x128xf32>
    %90 = arith.addf %85, %89 : vector<8x128xf32>
    %c1_71 = arith.constant 1 : index
    %c0_72 = arith.constant 0 : index
    %c6_73 = arith.constant 6 : index
    %91 = vector.load %arg5[%c1_71, %c0_72, %c6_73] : memref<2x8x256xf32, #tpu.memory_space<vmem>>, vector<1x8x128xf32>
    %92 = vector.shape_cast %91 : vector<1x8x128xf32> to vector<8x128xf32>
    %cst_74 = arith.constant 9.6572561E-19 : f32
    %93 = vector.broadcast %cst_74 : f32 to vector<8x128xf32>
    %94 = arith.mulf %92, %93 : vector<8x128xf32>
    %95 = arith.addf %90, %94 : vector<8x128xf32>
    %c0_75 = arith.constant 0 : index
    %c0_76 = arith.constant 0 : index
    %96 = vector.load %arg4[%c0_75, %c0_76] : memref<16x128xf32, #tpu.memory_space<vmem>>, vector<8x128xf32>
    tpu.vector_store %arg4[%c0_75, %c0_76], %95 {strides = array<i32>} : memref<16x128xf32, #tpu.memory_space<vmem>>, vector<8x128xf32>,
    %c0_77 = arith.constant 0 : index
    %c8 = arith.constant 8 : index
    %c0_78 = arith.constant 0 : index
    %97 = vector.load %arg2[%c0_77, %c8, %c0_78] : memref<2x16x128xf32, #tpu.memory_space<vmem>>, vector<1x8x128xf32>
    %98 = vector.shape_cast %97 : vector<1x8x128xf32> to vector<8x128xf32>
    %c0_79 = arith.constant 0 : index
    %c0_80 = arith.constant 0 : index
    %c0_81 = arith.constant 0 : index
    %99 = vector.load %arg5[%c0_79, %c0_80, %c0_81] : memref<2x8x256xf32, #tpu.memory_space<vmem>>, vector<1x8x128xf32>
    %100 = vector.shape_cast %99 : vector<1x8x128xf32> to vector<8x128xf32>
    %101 = vector.shape_cast %98 : vector<8x128xf32> to vector<1x8x128xf32>
    tpu.vector_store %arg5[%c0_79, %c0_80, %c0_81], %101 {strides = array<i32>} : memref<2x8x256xf32, #tpu.memory_space<vmem>>, vector<1x8x128xf32>,
    %c0_82 = arith.constant 0 : index
    %c8_83 = arith.constant 8 : index
    %c0_84 = arith.constant 0 : index
    %102 = vector.load %arg3[%c0_82, %c8_83, %c0_84] : memref<2x16x128xf32, #tpu.memory_space<vmem>>, vector<1x8x128xf32>
    %103 = vector.shape_cast %102 : vector<1x8x128xf32> to vector<8x128xf32>
    %c0_85 = arith.constant 0 : index
    %c0_86 = arith.constant 0 : index
    %c128_87 = arith.constant 128 : index
    %104 = vector.load %arg5[%c0_85, %c0_86, %c128_87] : memref<2x8x256xf32, #tpu.memory_space<vmem>>, vector<1x8x128xf32>
    %105 = vector.shape_cast %104 : vector<1x8x128xf32> to vector<8x128xf32>
    %106 = vector.shape_cast %103 : vector<8x128xf32> to vector<1x8x128xf32>
    tpu.vector_store %arg5[%c0_85, %c0_86, %c128_87], %106 {strides = array<i32>} : memref<2x8x256xf32, #tpu.memory_space<vmem>>, vector<1x8x128xf32>,
    %c1_88 = arith.constant 1 : index
    %c8_89 = arith.constant 8 : index
    %c0_90 = arith.constant 0 : index
    %107 = vector.load %arg2[%c1_88, %c8_89, %c0_90] : memref<2x16x128xf32, #tpu.memory_space<vmem>>, vector<1x8x128xf32>
    %108 = vector.shape_cast %107 : vector<1x8x128xf32> to vector<8x128xf32>
    %c1_91 = arith.constant 1 : index
    %c0_92 = arith.constant 0 : index
    %c0_93 = arith.constant 0 : index
    %109 = vector.load %arg5[%c1_91, %c0_92, %c0_93] : memref<2x8x256xf32, #tpu.memory_space<vmem>>, vector<1x8x128xf32>
    %110 = vector.shape_cast %109 : vector<1x8x128xf32> to vector<8x128xf32>
    %111 = vector.shape_cast %108 : vector<8x128xf32> to vector<1x8x128xf32>
    tpu.vector_store %arg5[%c1_91, %c0_92, %c0_93], %111 {strides = array<i32>} : memref<2x8x256xf32, #tpu.memory_space<vmem>>, vector<1x8x128xf32>,
    %c1_94 = arith.constant 1 : index
    %c8_95 = arith.constant 8 : index
    %c0_96 = arith.constant 0 : index
    %112 = vector.load %arg3[%c1_94, %c8_95, %c0_96] : memref<2x16x128xf32, #tpu.memory_space<vmem>>, vector<1x8x128xf32>
    %113 = vector.shape_cast %112 : vector<1x8x128xf32> to vector<8x128xf32>
    %c1_97 = arith.constant 1 : index
    %c0_98 = arith.constant 0 : index
    %c128_99 = arith.constant 128 : index
    %114 = vector.load %arg5[%c1_97, %c0_98, %c128_99] : memref<2x8x256xf32, #tpu.memory_space<vmem>>, vector<1x8x128xf32>
    %115 = vector.shape_cast %114 : vector<1x8x128xf32> to vector<8x128xf32>
    %116 = vector.shape_cast %113 : vector<8x128xf32> to vector<1x8x128xf32>
    tpu.vector_store %arg5[%c1_97, %c0_98, %c128_99], %116 {strides = array<i32>} : memref<2x8x256xf32, #tpu.memory_space<vmem>>, vector<1x8x128xf32>,
    %cst_100 = arith.constant 0.000000e+00 : f32
    %117 = vector.broadcast %cst_100 : f32 to vector<8x128xf32>
    %c0_101 = arith.constant 0 : index
    %c0_102 = arith.constant 0 : index
    %c0_103 = arith.constant 0 : index
    %118 = vector.load %arg5[%c0_101, %c0_102, %c0_103] : memref<2x8x256xf32, #tpu.memory_space<vmem>>, vector<1x8x128xf32>
    %119 = vector.shape_cast %118 : vector<1x8x128xf32> to vector<8x128xf32>
    %cst_104 = arith.constant 6.3147092E-19 : f32
    %120 = vector.broadcast %cst_104 : f32 to vector<8x128xf32>
    %121 = arith.mulf %119, %120 : vector<8x128xf32>
    %122 = arith.addf %117, %121 : vector<8x128xf32>
    %c0_105 = arith.constant 0 : index
    %c0_106 = arith.constant 0 : index
    %c1_107 = arith.constant 1 : index
    %123 = vector.load %arg5[%c0_105, %c0_106, %c1_107] : memref<2x8x256xf32, #tpu.memory_space<vmem>>, vector<1x8x128xf32>
    %124 = vector.shape_cast %123 : vector<1x8x128xf32> to vector<8x128xf32>
    %cst_108 = arith.constant 0.0119924499 : f32
    %125 = vector.broadcast %cst_108 : f32 to vector<8x128xf32>
    %126 = arith.mulf %124, %125 : vector<8x128xf32>
    %127 = arith.addf %122, %126 : vector<8x128xf32>
    %c0_109 = arith.constant 0 : index
    %c0_110 = arith.constant 0 : index
    %c2_111 = arith.constant 2 : index
    %128 = vector.load %arg5[%c0_109, %c0_110, %c2_111] : memref<2x8x256xf32, #tpu.memory_space<vmem>>, vector<1x8x128xf32>
    %129 = vector.shape_cast %128 : vector<1x8x128xf32> to vector<8x128xf32>
    %cst_112 = arith.constant -0.0648987293 : f32
    %130 = vector.broadcast %cst_112 : f32 to vector<8x128xf32>
    %131 = arith.mulf %129, %130 : vector<8x128xf32>
    %132 = arith.addf %127, %131 : vector<8x128xf32>
    %c0_113 = arith.constant 0 : index
    %c0_114 = arith.constant 0 : index
    %c3_115 = arith.constant 3 : index
    %133 = vector.load %arg5[%c0_113, %c0_114, %c3_115] : memref<2x8x256xf32, #tpu.memory_space<vmem>>, vector<1x8x128xf32>
    %134 = vector.shape_cast %133 : vector<1x8x128xf32> to vector<8x128xf32>
    %cst_116 = arith.constant 0.302744448 : f32
    %135 = vector.broadcast %cst_116 : f32 to vector<8x128xf32>
    %136 = arith.mulf %134, %135 : vector<8x128xf32>
    %137 = arith.addf %132, %136 : vector<8x128xf32>
    %c0_117 = arith.constant 0 : index
    %c0_118 = arith.constant 0 : index
    %c4_119 = arith.constant 4 : index
    %138 = vector.load %arg5[%c0_117, %c0_118, %c4_119] : memref<2x8x256xf32, #tpu.memory_space<vmem>>, vector<1x8x128xf32>
    %139 = vector.shape_cast %138 : vector<1x8x128xf32> to vector<8x128xf32>
    %cst_120 = arith.constant 0.302744448 : f32
    %140 = vector.broadcast %cst_120 : f32 to vector<8x128xf32>
    %141 = arith.mulf %139, %140 : vector<8x128xf32>
    %142 = arith.addf %137, %141 : vector<8x128xf32>
    %c0_121 = arith.constant 0 : index
    %c0_122 = arith.constant 0 : index
    %c5_123 = arith.constant 5 : index
    %143 = vector.load %arg5[%c0_121, %c0_122, %c5_123] : memref<2x8x256xf32, #tpu.memory_space<vmem>>, vector<1x8x128xf32>
    %144 = vector.shape_cast %143 : vector<1x8x128xf32> to vector<8x128xf32>
    %cst_124 = arith.constant -0.0648987293 : f32
    %145 = vector.broadcast %cst_124 : f32 to vector<8x128xf32>
    %146 = arith.mulf %144, %145 : vector<8x128xf32>
    %147 = arith.addf %142, %146 : vector<8x128xf32>
    %c0_125 = arith.constant 0 : index
    %c0_126 = arith.constant 0 : index
    %c6_127 = arith.constant 6 : index
    %148 = vector.load %arg5[%c0_125, %c0_126, %c6_127] : memref<2x8x256xf32, #tpu.memory_space<vmem>>, vector<1x8x128xf32>
    %149 = vector.shape_cast %148 : vector<1x8x128xf32> to vector<8x128xf32>
    %cst_128 = arith.constant 0.0119924499 : f32
    %150 = vector.broadcast %cst_128 : f32 to vector<8x128xf32>
    %151 = arith.mulf %149, %150 : vector<8x128xf32>
    %152 = arith.addf %147, %151 : vector<8x128xf32>
    %c0_129 = arith.constant 0 : index
    %c0_130 = arith.constant 0 : index
    %c7_131 = arith.constant 7 : index
    %153 = vector.load %arg5[%c0_129, %c0_130, %c7_131] : memref<2x8x256xf32, #tpu.memory_space<vmem>>, vector<1x8x128xf32>
    %154 = vector.shape_cast %153 : vector<1x8x128xf32> to vector<8x128xf32>
    %cst_132 = arith.constant 6.3147092E-19 : f32
    %155 = vector.broadcast %cst_132 : f32 to vector<8x128xf32>
    %156 = arith.mulf %154, %155 : vector<8x128xf32>
    %157 = arith.addf %152, %156 : vector<8x128xf32>
    %c1_133 = arith.constant 1 : index
    %c0_134 = arith.constant 0 : index
    %c0_135 = arith.constant 0 : index
    %158 = vector.load %arg5[%c1_133, %c0_134, %c0_135] : memref<2x8x256xf32, #tpu.memory_space<vmem>>, vector<1x8x128xf32>
    %159 = vector.shape_cast %158 : vector<1x8x128xf32> to vector<8x128xf32>
    %cst_136 = arith.constant 9.6572561E-19 : f32
    %160 = vector.broadcast %cst_136 : f32 to vector<8x128xf32>
    %161 = arith.mulf %159, %160 : vector<8x128xf32>
    %162 = arith.addf %157, %161 : vector<8x128xf32>
    %c1_137 = arith.constant 1 : index
    %c0_138 = arith.constant 0 : index
    %c1_139 = arith.constant 1 : index
    %163 = vector.load %arg5[%c1_137, %c0_138, %c1_139] : memref<2x8x256xf32, #tpu.memory_space<vmem>>, vector<1x8x128xf32>
    %164 = vector.shape_cast %163 : vector<1x8x128xf32> to vector<8x128xf32>
    %cst_140 = arith.constant -7.58177206E-18 : f32
    %165 = vector.broadcast %cst_140 : f32 to vector<8x128xf32>
    %166 = arith.mulf %164, %165 : vector<8x128xf32>
    %167 = arith.addf %162, %166 : vector<8x128xf32>
    %c1_141 = arith.constant 1 : index
    %c0_142 = arith.constant 0 : index
    %c2_143 = arith.constant 2 : index
    %168 = vector.load %arg5[%c1_141, %c0_142, %c2_143] : memref<2x8x256xf32, #tpu.memory_space<vmem>>, vector<1x8x128xf32>
    %169 = vector.shape_cast %168 : vector<1x8x128xf32> to vector<8x128xf32>
    %cst_144 = arith.constant 1.58318465E-17 : f32
    %170 = vector.broadcast %cst_144 : f32 to vector<8x128xf32>
    %171 = arith.mulf %169, %170 : vector<8x128xf32>
    %172 = arith.addf %167, %171 : vector<8x128xf32>
    %c1_145 = arith.constant 1 : index
    %c0_146 = arith.constant 0 : index
    %c3_147 = arith.constant 3 : index
    %173 = vector.load %arg5[%c1_145, %c0_146, %c3_147] : memref<2x8x256xf32, #tpu.memory_space<vmem>>, vector<1x8x128xf32>
    %174 = vector.shape_cast %173 : vector<1x8x128xf32> to vector<8x128xf32>
    %cst_148 = arith.constant 0.500323653 : f32
    %175 = vector.broadcast %cst_148 : f32 to vector<8x128xf32>
    %176 = arith.mulf %174, %175 : vector<8x128xf32>
    %177 = arith.addf %172, %176 : vector<8x128xf32>
    %c1_149 = arith.constant 1 : index
    %c0_150 = arith.constant 0 : index
    %c4_151 = arith.constant 4 : index
    %178 = vector.load %arg5[%c1_149, %c0_150, %c4_151] : memref<2x8x256xf32, #tpu.memory_space<vmem>>, vector<1x8x128xf32>
    %179 = vector.shape_cast %178 : vector<1x8x128xf32> to vector<8x128xf32>
    %cst_152 = arith.constant 1.58318465E-17 : f32
    %180 = vector.broadcast %cst_152 : f32 to vector<8x128xf32>
    %181 = arith.mulf %179, %180 : vector<8x128xf32>
    %182 = arith.addf %177, %181 : vector<8x128xf32>
    %c1_153 = arith.constant 1 : index
    %c0_154 = arith.constant 0 : index
    %c5_155 = arith.constant 5 : index
    %183 = vector.load %arg5[%c1_153, %c0_154, %c5_155] : memref<2x8x256xf32, #tpu.memory_space<vmem>>, vector<1x8x128xf32>
    %184 = vector.shape_cast %183 : vector<1x8x128xf32> to vector<8x128xf32>
    %cst_156 = arith.constant -7.58177206E-18 : f32
    %185 = vector.broadcast %cst_156 : f32 to vector<8x128xf32>
    %186 = arith.mulf %184, %185 : vector<8x128xf32>
    %187 = arith.addf %182, %186 : vector<8x128xf32>
    %c1_157 = arith.constant 1 : index
    %c0_158 = arith.constant 0 : index
    %c6_159 = arith.constant 6 : index
    %188 = vector.load %arg5[%c1_157, %c0_158, %c6_159] : memref<2x8x256xf32, #tpu.memory_space<vmem>>, vector<1x8x128xf32>
    %189 = vector.shape_cast %188 : vector<1x8x128xf32> to vector<8x128xf32>
    %cst_160 = arith.constant 9.6572561E-19 : f32
    %190 = vector.broadcast %cst_160 : f32 to vector<8x128xf32>
    %191 = arith.mulf %189, %190 : vector<8x128xf32>
    %192 = arith.addf %187, %191 : vector<8x128xf32>
    %c8_161 = arith.constant 8 : index
    %c0_162 = arith.constant 0 : index
    %193 = vector.load %arg4[%c8_161, %c0_162] : memref<16x128xf32, #tpu.memory_space<vmem>>, vector<8x128xf32>
    tpu.vector_store %arg4[%c8_161, %c0_162], %192 {strides = array<i32>} : memref<16x128xf32, #tpu.memory_space<vmem>>, vector<8x128xf32>,
    return
  }
  func.func @transform_0(%arg0: i32, %arg1: i32) -> (i32, i32, i32) {
    %c0_i32 = arith.constant 0 : i32
    %c0_i32_0 = arith.constant 0 : i32
    return %c0_i32, %arg0, %arg1 : i32, i32, i32
  }
  func.func @transform_1(%arg0: i32, %arg1: i32) -> (i32, i32, i32) {
    %c1_i32 = arith.constant 1 : i32
    %0 = arith.addi %arg1, %c1_i32 : i32
    %c1_i32_0 = arith.constant 1 : i32
    %1 = arith.muli %0, %c1_i32_0 : i32
    %c0_i32 = arith.constant 0 : i32
    %c0_i32_1 = arith.constant 0 : i32
    return %c0_i32, %arg0, %1 : i32, i32, i32
  }
  func.func @transform_2(%arg0: i32, %arg1: i32) -> (i32, i32) {
    %c0_i32 = arith.constant 0 : i32
    return %arg0, %arg1 : i32, i32
  }
}

</mosaic_0001>

<llo_original>
// kernel: tpu_custom_call.1
$region0: #{tpu_custom_call.1}
  #allocation0 [shape = 'u32[]', space=smem, size = 0x4, offset = 0x4, fixed_abs, tag = 'smem constant byte address 0x4 - core index']
  #allocation1 [shape = 'u32[72,128]{1,0:T(1,128)}', space=vmem, size = 0x9000, scoped, tag = 'internal scratch']
  #allocation2 [shape = 'f32[2,8,256]{2,1,0:T(8,128)}', space=vmem, size = 0x4000, scoped, tag = 'scratch operand']
  %s0 = inlined_call_operand.hbm [shape: f32[2,16,256], index: 0, kind: input, shape index: {}]
  %s1 = inlined_call_operand.hbm [shape: f32[2,16,256], index: 1, kind: input, shape index: {}]
  %s2 = inlined_call_operand.hbm [shape: f32[16,128], index: 2, kind: output, shape index: {}]
  %s3 = sld [smem:[#allocation0]]
  $region26: #{tpu_custom_call.1} parent=0
    _
  %s5 = ssub.s32 1, %s3
  %s6 = scalar_select 0, %s5, %s3
  $region1: #{tpu_custom_call.1} parent=0
    #allocation3 [shape = 'u8[16384]{0}', space=vmem, size = 0x4000, scoped, tag = 'input window, operand 0, single buffered']
    #allocation4 [shape = 's32[1]{0}', space=sflag, size = 0x4, scoped, tag = 'scoped memory for tpu_custom_call.1']
    #allocation5 [shape = 's32[1]{0}', space=sflag, size = 0x4, scoped, tag = 'scoped memory for tpu_custom_call.1']
    #allocation6 [shape = 'u8[16384]{0}', space=vmem, size = 0x4000, scoped, tag = 'input window, operand 1, single buffered']
    #allocation7 [shape = 's32[1]{0}', space=sflag, size = 0x4, scoped, tag = 'scoped memory for tpu_custom_call.1']
    #allocation8 [shape = 'u8[8192]{0}', space=vmem, size = 0x2000, scoped, tag = 'output window, operand 0, single buffered']
    %7 = vsyncpa [#allocation4], 0
    %8 = vsyncpa [#allocation7], 0
    %9 = vsyncpa [#allocation5], 0
    // Predicated region
    $region2: #{tpu_custom_call.1} parent=1 // pred_check
      _
    $region3: #{tpu_custom_call.1} parent=1 // pred_check_branch
      %11 = sbr.rel (0) target = $region5
    $region4: #{tpu_custom_call.1} parent=1 // pred_region
      %13 = vsyncadd [#allocation4], 0
      %s14 = sshll.u32 %s0, 4
      %s15 = int_to_ptr.hbm [resolvable:$true] %s14
      %s16 = sshll.u32 [#allocation3], 4
      %s17 = int_to_ptr.vmem [resolvable:$true] %s16
      %22 = dma.hbm_to_vmem [thread:$0]  %s15, 512, %s17, [#allocation4], 256, 128, 8
    $region5: #{tpu_custom_call.1} parent=1 // pred_fallthru
      _
    // Predicated region
    $region6: #{tpu_custom_call.1} parent=1 // pred_check
      _
    $region7: #{tpu_custom_call.1} parent=1 // pred_check_branch
      %24 = sbr.rel (0) target = $region9
    $region8: #{tpu_custom_call.1} parent=1 // pred_region
      %s25 = sadd.s32 0, 1
      %27 = vsyncadd [#allocation7], 0
      %s28 = smul.addr %s25, 8
      %s29 = scalar_lea.hbm %s1, %s28
      %s30 = sshll.u32 %s29, 4
      %s31 = int_to_ptr.hbm [resolvable:$true] %s30
      %s32 = sshll.u32 [#allocation6], 4
      %s33 = int_to_ptr.vmem [resolvable:$true] %s32
      %38 = dma.hbm_to_vmem [thread:$0]  %s31, 512, %s33, [#allocation7], 256, 128, 8
    $region9: #{tpu_custom_call.1} parent=1 // pred_fallthru
      _
    // Predicated region
    $region10: #{tpu_custom_call.1} parent=1 // pred_check
      _
    $region11: #{tpu_custom_call.1} parent=1 // pred_check_branch
      %40 = sbr.rel (0) target = $region13
    $region12: #{tpu_custom_call.1} parent=1 // pred_region
      %42 = dma.done [#allocation4], 512
    $region13: #{tpu_custom_call.1} parent=1 // pred_fallthru
      _
    // Predicated region
    $region14: #{tpu_custom_call.1} parent=1 // pred_check
      _
    $region15: #{tpu_custom_call.1} parent=1 // pred_check_branch
      %44 = sbr.rel (0) target = $region17
    $region16: #{tpu_custom_call.1} parent=1 // pred_region
      %46 = dma.done [#allocation7], 512
    $region17: #{tpu_custom_call.1} parent=1 // pred_fallthru
      _
    %s47 = sadd.s32 0, 1
    %v48 = vld [vmem:[#allocation3] sm:$0xff]
    %49 = vst [vmem:[#allocation2] sm:$0xff] %v48
    %v50 = vld [vmem:[#allocation6] sm:$0xff]
    %51 = vst [vmem:[#allocation2 + $0x8] sm:$0xff] %v50
    %s52 = scalar_lea.vmem [#allocation3], 16
    %v53 = vld [vmem:[%s52] sm:$0xff]
    %s54 = scalar_lea.vmem [#allocation2], 16
    %55 = vst [vmem:[%s54] sm:$0xff] %v53
    %s56 = scalar_lea.vmem [#allocation6], 16
    %v57 = vld [vmem:[%s56] sm:$0xff]
    %58 = vst [vmem:[%s54 + $0x8] sm:$0xff] %v57
    %v59 = vld [vmem:[#allocation2] sm:$0xff]
    %v60 = vmul.f32 %v59, 6.314709e-19
    %v61 = vadd.f32 %v60, 0.0
    %v62 = vld [vmem:[#allocation2 + $0x8] sm:$0xff]
    %v63 = vmul.f32 %v59, 0.01199245
    %v64 = vmul.f32 %v62, 0.01199245
    %67 = vrot.lane.b32.xlu0 %v63, 127
    %v68 = vpop.permute.xlu0 %67
    %69 = vrot.lane.b32.xlu0 %v64, 127
    %v70 = vpop.permute.xlu0 %69
    %vm71 = vcmask 1039360
    %v72 = vsel %vm71, %v68, %v70
    %v74 = vadd.f32 %v61, %v72
    %v75 = vmul.f32 %v59, -0.06489873
    %v76 = vmul.f32 %v62, -0.06489873
    %79 = vrot.lane.b32.xlu0 %v75, 126
    %v80 = vpop.permute.xlu0 %79
    %81 = vrot.lane.b32.xlu0 %v76, 126
    %v82 = vpop.permute.xlu0 %81
    %vm83 = vcmask 1031168
    %v84 = vsel %vm83, %v80, %v82
    %v86 = vadd.f32 %v74, %v84
    %v87 = vmul.f32 %v59, 0.30274445
    %v88 = vmul.f32 %v62, 0.30274445
    %91 = vrot.lane.b32.xlu0 %v87, 125
    %v92 = vpop.permute.xlu0 %91
    %93 = vrot.lane.b32.xlu0 %v88, 125
    %v94 = vpop.permute.xlu0 %93
    %vm95 = vcmask 1022976
    %v96 = vsel %vm95, %v92, %v94
    %v98 = vadd.f32 %v86, %v96
    %99 = vrot.lane.b32.xlu0 %v87, 124
    %v100 = vpop.permute.xlu0 %99
    %101 = vrot.lane.b32.xlu0 %v88, 124
    %v102 = vpop.permute.xlu0 %101
    %vm103 = vcmask 1014784
    %v104 = vsel %vm103, %v100, %v102
    %v106 = vadd.f32 %v98, %v104
    %107 = vrot.lane.b32.xlu0 %v75, 123
    %v108 = vpop.permute.xlu0 %107
    %109 = vrot.lane.b32.xlu0 %v76, 123
    %v110 = vpop.permute.xlu0 %109
    %vm111 = vcmask 1006592
    %v112 = vsel %vm111, %v108, %v110
    %v114 = vadd.f32 %v106, %v112
    %115 = vrot.lane.b32.xlu0 %v63, 122
    %v116 = vpop.permute.xlu0 %115
    %117 = vrot.lane.b32.xlu0 %v64, 122
    %v118 = vpop.permute.xlu0 %117
    %vm119 = vcmask 998400
    %v120 = vsel %vm119, %v116, %v118
    %v122 = vadd.f32 %v114, %v120
    %v123 = vmul.f32 %v62, 6.314709e-19
    %126 = vrot.lane.b32.xlu0 %v60, 121
    %v127 = vpop.permute.xlu0 %126
    %128 = vrot.lane.b32.xlu0 %v123, 121
    %v129 = vpop.permute.xlu0 %128
    %vm130 = vcmask 990208
    %v131 = vsel %vm130, %v127, %v129
    %v133 = vadd.f32 %v122, %v131
    %v134 = vld [vmem:[%s54] sm:$0xff]
    %v135 = vmul.f32 %v134, 9.657256e-19
    %v136 = vadd.f32 %v133, %v135
    %v137 = vld [vmem:[%s54 + $0x8] sm:$0xff]
    %v138 = vmul.f32 %v134, -7.581772e-18
    %v139 = vmul.f32 %v137, -7.581772e-18
    %142 = vrot.lane.b32.xlu0 %v138, 127
    %v143 = vpop.permute.xlu0 %142
    %144 = vrot.lane.b32.xlu0 %v139, 127
    %v145 = vpop.permute.xlu0 %144
    %v146 = vsel %vm71, %v143, %v145
    %v148 = vadd.f32 %v136, %v146
    %v149 = vmul.f32 %v134, 1.5831846e-17
    %v150 = vmul.f32 %v137, 1.5831846e-17
    %153 = vrot.lane.b32.xlu0 %v149, 126
    %v154 = vpop.permute.xlu0 %153
    %155 = vrot.lane.b32.xlu0 %v150, 126
    %v156 = vpop.permute.xlu0 %155
    %v157 = vsel %vm83, %v154, %v156
    %v159 = vadd.f32 %v148, %v157
    %v160 = vmul.f32 %v134, 0.50032365
    %v161 = vmul.f32 %v137, 0.50032365
    %164 = vrot.lane.b32.xlu0 %v160, 125
    %v165 = vpop.permute.xlu0 %164
    %166 = vrot.lane.b32.xlu0 %v161, 125
    %v167 = vpop.permute.xlu0 %166
    %v168 = vsel %vm95, %v165, %v167
    %v170 = vadd.f32 %v159, %v168
    %171 = vrot.lane.b32.xlu0 %v149, 124
    %v172 = vpop.permute.xlu0 %171
    %173 = vrot.lane.b32.xlu0 %v150, 124
    %v174 = vpop.permute.xlu0 %173
    %v175 = vsel %vm103, %v172, %v174
    %v177 = vadd.f32 %v170, %v175
    %178 = vrot.lane.b32.xlu0 %v138, 123
    %v179 = vpop.permute.xlu0 %178
    %180 = vrot.lane.b32.xlu0 %v139, 123
    %v181 = vpop.permute.xlu0 %180
    %v182 = vsel %vm111, %v179, %v181
    %v184 = vadd.f32 %v177, %v182
    %v185 = vmul.f32 %v137, 9.657256e-19
    %188 = vrot.lane.b32.xlu0 %v135, 122
    %v189 = vpop.permute.xlu0 %188
    %190 = vrot.lane.b32.xlu0 %v185, 122
    %v191 = vpop.permute.xlu0 %190
    %v192 = vsel %vm119, %v189, %v191
    %v194 = vadd.f32 %v184, %v192
    %195 = vst [vmem:[#allocation8] sm:$0xff] %v194
    %v196 = vld [vmem:[#allocation3 + $0x8] sm:$0xff]
    %197 = vst [vmem:[#allocation2] sm:$0xff] %v196
    %v198 = vld [vmem:[#allocation6 + $0x8] sm:$0xff]
    %199 = vst [vmem:[#allocation2 + $0x8] sm:$0xff] %v198
    %v200 = vld [vmem:[%s52 + $0x8] sm:$0xff]
    %201 = vst [vmem:[%s54] sm:$0xff] %v200
    %v202 = vld [vmem:[%s56 + $0x8] sm:$0xff]
    %203 = vst [vmem:[%s54 + $0x8] sm:$0xff] %v202
    %v204 = vld [vmem:[#allocation2] sm:$0xff]
    %v205 = vmul.f32 %v204, 6.314709e-19
    %v206 = vadd.f32 %v205, 0.0
    %v207 = vld [vmem:[#allocation2 + $0x8] sm:$0xff]
    %v208 = vmul.f32 %v204, 0.01199245
    %v209 = vmul.f32 %v207, 0.01199245
    %212 = vrot.lane.b32.xlu0 %v208, 127
    %v213 = vpop.permute.xlu0 %212
    %214 = vrot.lane.b32.xlu0 %v209, 127
    %v215 = vpop.permute.xlu0 %214
    %v216 = vsel %vm71, %v213, %v215
    %v218 = vadd.f32 %v206, %v216
    %v219 = vmul.f32 %v204, -0.06489873
    %v220 = vmul.f32 %v207, -0.06489873
    %223 = vrot.lane.b32.xlu0 %v219, 126
    %v224 = vpop.permute.xlu0 %223
    %225 = vrot.lane.b32.xlu0 %v220, 126
    %v226 = vpop.permute.xlu0 %225
    %v227 = vsel %vm83, %v224, %v226
    %v229 = vadd.f32 %v218, %v227
    %v230 = vmul.f32 %v204, 0.30274445
    %v231 = vmul.f32 %v207, 0.30274445
    %234 = vrot.lane.b32.xlu0 %v230, 125
    %v235 = vpop.permute.xlu0 %234
    %236 = vrot.lane.b32.xlu0 %v231, 125
    %v237 = vpop.permute.xlu0 %236
    %v238 = vsel %vm95, %v235, %v237
    %v240 = vadd.f32 %v229, %v238
    %241 = vrot.lane.b32.xlu0 %v230, 124
    %v242 = vpop.permute.xlu0 %241
    %243 = vrot.lane.b32.xlu0 %v231, 124
    %v244 = vpop.permute.xlu0 %243
    %v245 = vsel %vm103, %v242, %v244
    %v247 = vadd.f32 %v240, %v245
    %248 = vrot.lane.b32.xlu0 %v219, 123
    %v249 = vpop.permute.xlu0 %248
    %250 = vrot.lane.b32.xlu0 %v220, 123
    %v251 = vpop.permute.xlu0 %250
    %v252 = vsel %vm111, %v249, %v251
    %v254 = vadd.f32 %v247, %v252
    %255 = vrot.lane.b32.xlu0 %v208, 122
    %v256 = vpop.permute.xlu0 %255
    %257 = vrot.lane.b32.xlu0 %v209, 122
    %v258 = vpop.permute.xlu0 %257
    %v259 = vsel %vm119, %v256, %v258
    %v261 = vadd.f32 %v254, %v259
    %v262 = vmul.f32 %v207, 6.314709e-19
    %265 = vrot.lane.b32.xlu0 %v205, 121
    %v266 = vpop.permute.xlu0 %265
    %267 = vrot.lane.b32.xlu0 %v262, 121
    %v268 = vpop.permute.xlu0 %267
    %v269 = vsel %vm130, %v266, %v268
    %v271 = vadd.f32 %v261, %v269
    %v272 = vld [vmem:[%s54] sm:$0xff]
    %v273 = vmul.f32 %v272, 9.657256e-19
    %v274 = vadd.f32 %v271, %v273
    %v275 = vld [vmem:[%s54 + $0x8] sm:$0xff]
    %v276 = vmul.f32 %v272, -7.581772e-18
    %v277 = vmul.f32 %v275, -7.581772e-18
    %280 = vrot.lane.b32.xlu0 %v276, 127
    %v281 = vpop.permute.xlu0 %280
    %282 = vrot.lane.b32.xlu0 %v277, 127
    %v283 = vpop.permute.xlu0 %282
    %v284 = vsel %vm71, %v281, %v283
    %v286 = vadd.f32 %v274, %v284
    %v287 = vmul.f32 %v272, 1.5831846e-17
    %v288 = vmul.f32 %v275, 1.5831846e-17
    %291 = vrot.lane.b32.xlu0 %v287, 126
    %v292 = vpop.permute.xlu0 %291
    %293 = vrot.lane.b32.xlu0 %v288, 126
    %v294 = vpop.permute.xlu0 %293
    %v295 = vsel %vm83, %v292, %v294
    %v297 = vadd.f32 %v286, %v295
    %v298 = vmul.f32 %v272, 0.50032365
    %v299 = vmul.f32 %v275, 0.50032365
    %302 = vrot.lane.b32.xlu0 %v298, 125
    %v303 = vpop.permute.xlu0 %302
    %304 = vrot.lane.b32.xlu0 %v299, 125
    %v305 = vpop.permute.xlu0 %304
    %v306 = vsel %vm95, %v303, %v305
    %v308 = vadd.f32 %v297, %v306
    %309 = vrot.lane.b32.xlu0 %v287, 124
    %v310 = vpop.permute.xlu0 %309
    %311 = vrot.lane.b32.xlu0 %v288, 124
    %v312 = vpop.permute.xlu0 %311
    %v313 = vsel %vm103, %v310, %v312
    %v315 = vadd.f32 %v308, %v313
    %316 = vrot.lane.b32.xlu0 %v276, 123
    %v317 = vpop.permute.xlu0 %316
    %318 = vrot.lane.b32.xlu0 %v277, 123
    %v319 = vpop.permute.xlu0 %318
    %v320 = vsel %vm111, %v317, %v319
    %v322 = vadd.f32 %v315, %v320
    %v323 = vmul.f32 %v275, 9.657256e-19
    %326 = vrot.lane.b32.xlu0 %v273, 122
    %v327 = vpop.permute.xlu0 %326
    %328 = vrot.lane.b32.xlu0 %v323, 122
    %v329 = vpop.permute.xlu0 %328
    %v330 = vsel %vm119, %v327, %v329
    %v332 = vadd.f32 %v322, %v330
    %333 = vst [vmem:[#allocation8 + $0x8] sm:$0xff] %v332
    // Predicated region
    $region18: #{tpu_custom_call.1} parent=1 // pred_check
      _
    $region19: #{tpu_custom_call.1} parent=1 // pred_check_branch
      %335 = sbr.rel (0) target = $region21
    $region20: #{tpu_custom_call.1} parent=1 // pred_region
      %337 = vsyncadd [#allocation5], 0
      %s338 = sshll.u32 [#allocation8], 4
      %s339 = int_to_ptr.vmem [resolvable:$true] %s338
      %s340 = sshll.u32 %s2, 4
      %s341 = int_to_ptr.hbm [resolvable:$true] %s340
      %346 = dma.vmem_to_hbm [thread:$0]  %s339, 256, %s341, [#allocation5], 128, 128, 8
    $region21: #{tpu_custom_call.1} parent=1 // pred_fallthru
      _
    // Predicated region
    $region22: #{tpu_custom_call.1} parent=1 // pred_check
      _
    $region23: #{tpu_custom_call.1} parent=1 // pred_check_branch
      %348 = sbr.rel (0) target = $region25
    $region24: #{tpu_custom_call.1} parent=1 // pred_region
      %350 = dma.done [#allocation5], 256
    $region25: #{tpu_custom_call.1} parent=1 // pred_fallthru
      _
    %351 = vsyncpa [#allocation4], 1
    %352 = vsyncpa [#allocation7], 1
    %353 = vsyncpa [#allocation5], 1

</llo_original>
